<compile_context>
chip_gen: v5e
topology: v5e:2x2
jax: 0.10.0
libtpu: 0.0.40
codegen_flags: <defaults>
</compile_context>

<pallas_src>
import functools

import jax
import jax.numpy as jnp
from jax.experimental import pallas as pl
from jax.experimental.pallas import tpu as pltpu


def _upconv_matmul_kernel(x_ref, w_ref, b_ref, o_ref):
    # (4*Cout, Cin) bf16 @ (Cin, tm) bf16 on the MXU with f32 accumulation.
    # The flattened spatial axis sits on the 128-lane axis, so both the x load
    # and the y store are lane-dense (unmasked vst).  x arrives in its source
    # dtype and is cast to bf16 on the VPU here (no separate astype HBM pass).
    x = x_ref[0].astype(jnp.bfloat16)
    acc = jnp.dot(w_ref[...], x, preferred_element_type=jnp.float32)
    o_ref[0] = (acc + b_ref[...]).astype(o_ref.dtype)


def _upconv_matmul(x_cm, w_t, b_col, *, tm=None):
    """x_cm: (N, Cin, S) channel-first, S = D*H*W (any float dtype);
    w_t: (4*Cout, Cin) bf16 with row r = (kh*2 + kw)*Cout + co;
    b_col: (4*Cout, 1) f32.  Returns y: (N, 4*Cout, S) bf16."""
    N, Cin, S = x_cm.shape
    K4 = w_t.shape[0]
    if tm is None:
        # Large lane tiles amortize the ~0.35 us/grid-step overhead; cap at the
        # padded spatial extent so tiny inputs don't allocate a huge block.
        # With bf16 output, tm=1024 fits comfortably in v7x's 64 MiB VMEM for
        # real U-Net channel counts (Cin~512, 4*Cout~2048); v6e can go to 2048.
        tm = min(1024, pl.cdiv(S, 128) * 128)
        if N == 1 and S > 128:
            # v7x has 2 TensorCores per chip: keep >=2 parallel grid steps.
            tm = min(tm, max(128, pl.cdiv(pl.cdiv(S, 2), 128) * 128))
    grid = (N, pl.cdiv(S, tm))
    return pl.pallas_call(
        _upconv_matmul_kernel,
        out_shape=jax.ShapeDtypeStruct((N, K4, S), jnp.bfloat16),
        grid_spec=pltpu.PrefetchScalarGridSpec(
            num_scalar_prefetch=0,
            grid=grid,
            in_specs=[
                pl.BlockSpec((1, Cin, tm), lambda n, i: (n, 0, i)),
                pl.BlockSpec((K4, Cin), lambda n, i: (0, 0)),
                pl.BlockSpec((K4, 1), lambda n, i: (0, 0)),
            ],
            out_specs=pl.BlockSpec((1, K4, tm), lambda n, i: (n, 0, i)),
        ),
        compiler_params=pltpu.CompilerParams(
            dimension_semantics=("parallel", "parallel"),
            vmem_limit_bytes=64 * 1024 * 1024,  # v5e default scoped is 16 MiB
        ),
        cost_estimate=pl.CostEstimate(
            flops=2 * N * S * Cin * K4,
            transcendentals=0,
            bytes_accessed=(
                N * Cin * S * x_cm.dtype.itemsize   # x read (source dtype)
                + K4 * Cin * 2 + K4 * 4             # weights + bias
                + N * K4 * S * 2                    # bf16 output write
            ),
        ),
    )(x_cm, w_t, b_col)


def up_convolution_forward(x, bridge, weight, bias, *, tm=None):
    """x: (N, C_in, D, H, W); bridge: (N, C_out, Db, Hb, Wb)
    weight: (C_in, C_out, 1, 2, 2) (PyTorch ConvTranspose3d layout); bias: (C_out,)
    Returns (N, 2*C_out, 2D-1, 2H, 2W) NCDHW, matching torch.cat((crop, up), 1).
    The transposed-conv is done in bf16 (f32 accumulation) -- documented
    accuracy tradeoff vs PyTorch's f32 ConvTranspose3d (~1e-3 relative)."""
    N, Cin, D, H, W = x.shape
    Cout = weight.shape[1]

    # Pack the four (kh, kw) taps as rows: r = (kh*2 + kw)*Cout + co.
    w_t = jnp.transpose(weight[:, :, 0], (2, 3, 1, 0)).reshape(4 * Cout, Cin)
    b_col = jnp.tile(bias.astype(jnp.float32), 4).reshape(4 * Cout, 1)

    # Channel-first all the way: this reshape is free (no HBM transpose), and
    # the bf16 cast of x happens inside the kernel.
    x_cm = x.reshape(N, Cin, D * H * W)

    y = _upconv_matmul(x_cm, w_t.astype(jnp.bfloat16), b_col, tm=tm)  # bf16

    # Scatter the 4 taps into the even-depth planes.  This transpose is the
    # one remaining extra HBM pass (now in bf16, half its former traffic).
    # TODO(synk): fold into the kernel via a lane-interleaved store into a
    # bias-prefilled aliased output so y never round-trips through HBM.
    y = y.reshape(N, 2, 2, Cout, D, H, W)
    even = jnp.transpose(y, (0, 3, 4, 5, 1, 6, 2)).reshape(N, Cout, D, 2 * H, 2 * W)

    Do, Ho, Wo = 2 * D - 1, 2 * H, 2 * W
    out_dtype = bridge.dtype
    # Odd-depth planes are bias-only; interleave them with the even planes and
    # concat the cropped bridge on channels in one nested expression so XLA
    # can emit the final (N, 2*Cout, Do, Ho, Wo) tensor as a single fusion.
    odd = jnp.broadcast_to(
        bias.astype(jnp.bfloat16)[None, :, None, None, None],
        (N, Cout, D - 1, Ho, Wo),
    )
    body = jnp.stack([even[:, :, : D - 1], odd], axis=3).reshape(
        N, Cout, 2 * (D - 1), Ho, Wo
    )
    up = jnp.concatenate([body, even[:, :, D - 1:]], axis=2)  # (N,Cout,Do,Ho,Wo)

    # crop(bridge, up): center-crop bridge spatially, then concat on channels.
    _, _, Db, Hb, Wb = bridge.shape
    off_d = (Db - Do) // 2
    off_h = (Hb - Ho) // 2
    off_w = (Wb - Wo) // 2
    crop = bridge[:, :, off_d:off_d + Do, off_h:off_h + Ho, off_w:off_w + Wo]
    return jnp.concatenate([crop.astype(out_dtype), up.astype(out_dtype)], axis=1)


def _reference_forward(x, bridge, weight, bias):
    """Pure-JAX reference with the same bf16 quantization points as the kernel."""
    N, Cin, D, H, W = x.shape
    Cout = weight.shape[1]
    xq = x.astype(jnp.bfloat16).astype(jnp.float32)
    wq = weight[:, :, 0].astype(jnp.bfloat16).astype(jnp.float32)
    t = jnp.einsum("ncdhw,coij->nodhiwj", xq, wq)
    even = (
        t.reshape(N, Cout, D, 2 * H, 2 * W) + bias[None, :, None, None, None]
    ).astype(jnp.bfloat16)
    Do, Ho, Wo = 2 * D - 1, 2 * H, 2 * W
    up = jnp.broadcast_to(
        bias.astype(jnp.bfloat16)[None, :, None, None, None], (N, Cout, Do, Ho, Wo)
    )
    up = up.at[:, :, ::2].set(even)
    Db, Hb, Wb = bridge.shape[2:]
    od, oh, ow = (Db - Do) // 2, (Hb - Ho) // 2, (Wb - Wo) // 2
    crop = bridge[:, :, od:od + Do, oh:oh + Ho, ow:ow + Wo]
    return jnp.concatenate([crop, up.astype(bridge.dtype)], axis=1)


if __name__ == "__main__":
    key = jax.random.PRNGKey(0)
    k1, k2, k3, k4, k5, k6 = jax.random.split(key, 6)

    N, Cin, Cout = 2, 16, 8
    D, H, W = 3, 8, 8                    # -> up spatial (5, 16, 16)
    Db, Hb, Wb = 7, 20, 20               # bridge slightly larger, gets cropped

    x = jax.random.normal(k1, (N, Cin, D, H, W), jnp.float32)
    bridge = jax.random.normal(k2, (N, Cout, Db, Hb, Wb), jnp.float32)

    # Deterministic ConvTranspose3d parameters (shape per nn.ConvTranspose3d).
    fan = Cin * 1 * 2 * 2
    bound = 1.0 / jnp.sqrt(jnp.float32(fan))
    weight = jax.random.uniform(k3, (Cin, Cout, 1, 2, 2), jnp.float32, -bound, bound)
    bias = jax.random.uniform(k4, (Cout,), jnp.float32, -bound, bound)

    fwd = jax.jit(up_convolution_forward)
    out = jax.block_until_ready(fwd(x, bridge, weight, bias))
    assert out.shape == (N, 2 * Cout, 2 * D - 1, 2 * H, 2 * W), out.shape

    ref = _reference_forward(x, bridge, weight, bias)
    max_err = float(jnp.max(jnp.abs(out.astype(jnp.float32) - ref.astype(jnp.float32))))
    assert jnp.allclose(out.astype(jnp.float32), ref.astype(jnp.float32),
                        atol=2e-2, rtol=2e-2), max_err

    # Ragged / multi-tile M check: S = 3*16*12 = 576 with tm=512 -> 2 spatial
    # tiles per batch entry, the second partially out of bounds (block clipping).
    D2, H2, W2 = 3, 16, 12
    Db2, Hb2, Wb2 = 7, 36, 28
    x2 = jax.random.normal(k5, (N, Cin, D2, H2, W2), jnp.float32)
    bridge2 = jax.random.normal(k6, (N, Cout, Db2, Hb2, Wb2), jnp.float32)
    fwd2 = jax.jit(functools.partial(up_convolution_forward, tm=512))
    out2 = jax.block_until_ready(fwd2(x2, bridge2, weight, bias))
    assert out2.shape == (N, 2 * Cout, 2 * D2 - 1, 2 * H2, 2 * W2), out2.shape
    ref2 = _reference_forward(x2, bridge2, weight, bias)
    max_err2 = float(jnp.max(jnp.abs(out2.astype(jnp.float32) - ref2.astype(jnp.float32))))
    assert jnp.allclose(out2.astype(jnp.float32), ref2.astype(jnp.float32),
                        atol=2e-2, rtol=2e-2), max_err2

    print("KERNEL_OK")
</pallas_src>

<mosaic_0001>
module attributes {stable_mosaic.version = 11 : i64} {
  func.func @_upconv_matmul_kernel(%arg0: i32, %arg1: i32, %arg2: memref<1x16x256xf32, #tpu.memory_space<vmem>>, %arg3: memref<32x16xbf16, #tpu.memory_space<vmem>>, %arg4: memref<32x1xf32, #tpu.memory_space<vmem>>, %arg5: memref<1x32x256xbf16, #tpu.memory_space<vmem>>) attributes {dimension_semantics = [#tpu.dimension_semantics<parallel>, #tpu.dimension_semantics<parallel>], iteration_bounds = array<i64: 2, 1>, scalar_prefetch = 0 : i64, scratch_operands = 0 : i64, tpu.core_type = #tpu.core_type<tc>, window_params = [{transform_indices = @transform_0, window_bounds = array<i64: 1, 16, 256>}, {pipeline_mode = #tpu.pipeline_mode<synchronous>, transform_indices = @transform_1, window_bounds = array<i64: 32, 16>}, {pipeline_mode = #tpu.pipeline_mode<synchronous>, transform_indices = @transform_2, window_bounds = array<i64: 32, 1>}, {transform_indices = @transform_3, window_bounds = array<i64: 1, 32, 256>}]} {
    %c0 = arith.constant 0 : index
    %c0_0 = arith.constant 0 : index
    %c0_1 = arith.constant 0 : index
    %0 = vector.load %arg2[%c0, %c0_0, %c0_1] : memref<1x16x256xf32, #tpu.memory_space<vmem>>, vector<1x16x256xf32>
    %1 = vector.shape_cast %0 : vector<1x16x256xf32> to vector<16x256xf32>
    %2 = arith.truncf %1 : vector<16x256xf32> to vector<16x256xbf16>
    %c0_2 = arith.constant 0 : index
    %c0_3 = arith.constant 0 : index
    %3 = vector.load %arg3[%c0_2, %c0_3] : memref<32x16xbf16, #tpu.memory_space<vmem>>, vector<32x16xbf16>
    %cst = arith.constant dense<0.000000e+00> : vector<32x256xf32>
    %4 = tpu.matmul %3, %2, %cst {dimension_numbers = #tpu.dot_dimension_numbers<[1], [0], [0], [1], [0, 0, 1, 1], [], []>} : vector<32x16xbf16>, vector<16x256xbf16>, vector<32x256xf32> -> vector<32x256xf32>
    %c0_4 = arith.constant 0 : index
    %c0_5 = arith.constant 0 : index
    %5 = vector.load %arg4[%c0_4, %c0_5] : memref<32x1xf32, #tpu.memory_space<vmem>>, vector<32x1xf32>
    %6 = vector.broadcast %5 : vector<32x1xf32> to vector<32x256xf32>
    %7 = arith.addf %4, %6 : vector<32x256xf32>
    %8 = arith.truncf %7 : vector<32x256xf32> to vector<32x256xbf16>
    %c0_6 = arith.constant 0 : index
    %c0_7 = arith.constant 0 : index
    %c0_8 = arith.constant 0 : index
    %9 = vector.load %arg5[%c0_6, %c0_7, %c0_8] : memref<1x32x256xbf16, #tpu.memory_space<vmem>>, vector<1x32x256xbf16>
    %10 = vector.shape_cast %9 : vector<1x32x256xbf16> to vector<32x256xbf16>
    %11 = vector.shape_cast %8 : vector<32x256xbf16> to vector<1x32x256xbf16>
    tpu.vector_store %arg5[%c0_6, %c0_7, %c0_8], %11 {strides = array<i32>} : memref<1x32x256xbf16, #tpu.memory_space<vmem>>, vector<1x32x256xbf16>,
    return
  }
  func.func @transform_0(%arg0: i32, %arg1: i32) -> (i32, i32, i32) {
    %c0_i32 = arith.constant 0 : i32
    %c0_i32_0 = arith.constant 0 : i32
    return %arg0, %c0_i32, %arg1 : i32, i32, i32
  }
  func.func @transform_1(%arg0: i32, %arg1: i32) -> (i32, i32) {
    %c0_i32 = arith.constant 0 : i32
    %c0_i32_0 = arith.constant 0 : i32
    %c0_i32_1 = arith.constant 0 : i32
    return %c0_i32, %c0_i32_0 : i32, i32
  }
  func.func @transform_2(%arg0: i32, %arg1: i32) -> (i32, i32) {
    %c0_i32 = arith.constant 0 : i32
    %c0_i32_0 = arith.constant 0 : i32
    %c0_i32_1 = arith.constant 0 : i32
    return %c0_i32, %c0_i32_0 : i32, i32
  }
  func.func @transform_3(%arg0: i32, %arg1: i32) -> (i32, i32, i32) {
    %c0_i32 = arith.constant 0 : i32
    %c0_i32_0 = arith.constant 0 : i32
    return %arg0, %c0_i32, %arg1 : i32, i32, i32
  }
}

</mosaic_0001>

<llo_original>
// kernel: tile.8
$region0: #{tile.8}
  #allocation2 [shape = 's32[1]{0}', space=sflag, size = 0x4, scoped, tag = 'scoped memory for tile.8']
  %s0 = inlined_call_operand.hbm [shape: f32[8], index: 0, kind: input, shape index: {}]
  %s1 = inlined_call_operand.vmem [shape: f32[4,8], index: 1, kind: output, shape index: {}]
  $region1: #{tile.8} parent=0
    #allocation0 [shape = 'u8[512]{0}', space=vmem, size = 0x400, scoped, tag = 'operand span for operand 0']
    #allocation1 [shape = 's32[1]{0}', space=sflag, size = 0x4, scoped, tag = 'scoped memory for tile.8']
    %2 = vsyncpa [#allocation1], 0
    // Predicated region
    $region2: #{tile.8} parent=1 // pred_check
      _
    $region3: #{tile.8} parent=1 // pred_check_branch
      %4 = sbr.rel (0) target = $region5
    $region4: #{tile.8} parent=1 // pred_region
      %6 = vsyncadd [#allocation1], 0
      %s8 = sshll.u32 %s0, 4
      %s9 = int_to_ptr.hbm [resolvable:$true] %s8
      %s10 = sshll.u32 [#allocation0], 4
      %s11 = int_to_ptr.vmem [resolvable:$true] %s10
      %13 = dma.hbm_to_vmem [thread:$0]  %s9, 16, %s11, [#allocation1]
    $region5: #{tile.8} parent=1 // pred_fallthru
      _
    // Predicated region
    $region6: #{tile.8} parent=1 // pred_check
      _
    $region7: #{tile.8} parent=1 // pred_check_branch
      %15 = sbr.rel (0) target = $region9
    $region8: #{tile.8} parent=1 // pred_region
      %17 = dma.done [#allocation1], 16
    $region9: #{tile.8} parent=1 // pred_fallthru
      _
    %v18 = vld [vmem:[#allocation0] ss:$0 sm:$0xff]
    %19 = vst [vmem:[%s1] sm:$0xf] %v18
    %20 = vsyncpa [#allocation1], 1

// kernel: tile.0
$region0: #{tile.0}
  %s0 = inlined_call_operand.vmem [shape: f32[4,8], index: 0, kind: input, shape index: {}]
  %s1 = inlined_call_operand.vmem [shape: f32[32,1], index: 1, kind: output, shape index: {}]
  $region1: #{tile.0} parent=0
    #allocation0 [shape = 'u8[4096]{0}', space=vmem, size = 0x1000, scoped, tag = 'scoped mem for input reshape']
    %s3 = ssub.s32 16, 1
    %v4 = vld [vmem:[%s0] sm:%s3]
    %5 = vst [vmem:[#allocation0] sm:%s3] %v4
    %v6 = vld [vmem:[#allocation0] sm:$0xf]
    %vm7 = vcmask 7168
    %8 = vst.msk [vmem:[%s1] ss:$8 sm:$0xf] %vm7, %v6
    %v9 = vld [vmem:[#allocation0] sm:$0xf]
    %10 = vrot.lane.b32.xlu0 %v9, 127
    %v11 = vpop.permute.xlu0 %10
    %vm12 = vcmask 7168
    %s13 = scalar_lea.vmem %s1, 1
    %14 = vst.msk [vmem:[%s13] ss:$8 sm:$0xf] %vm12, %v11
    %v15 = vld [vmem:[#allocation0] sm:$0xf]
    %16 = vrot.lane.b32.xlu0 %v15, 126
    %v17 = vpop.permute.xlu0 %16
    %vm18 = vcmask 7168
    %s19 = scalar_lea.vmem %s1, 2
    %20 = vst.msk [vmem:[%s19] ss:$8 sm:$0xf] %vm18, %v17
    %v21 = vld [vmem:[#allocation0] sm:$0xf]
    %22 = vrot.lane.b32.xlu0 %v21, 125
    %v23 = vpop.permute.xlu0 %22
    %vm24 = vcmask 7168
    %s25 = scalar_lea.vmem %s1, 3
    %26 = vst.msk [vmem:[%s25] ss:$8 sm:$0xf] %vm24, %v23
    %v27 = vld [vmem:[#allocation0] sm:$0xf]
    %28 = vrot.lane.b32.xlu0 %v27, 124
    %v29 = vpop.permute.xlu0 %28
    %vm30 = vcmask 7168
    %s31 = scalar_lea.vmem %s1, 4
    %32 = vst.msk [vmem:[%s31] ss:$8 sm:$0xf] %vm30, %v29
    %v33 = vld [vmem:[#allocation0] sm:$0xf]
    %34 = vrot.lane.b32.xlu0 %v33, 123
    %v35 = vpop.permute.xlu0 %34
    %vm36 = vcmask 7168
    %s37 = scalar_lea.vmem %s1, 5
    %38 = vst.msk [vmem:[%s37] ss:$8 sm:$0xf] %vm36, %v35
    %v39 = vld [vmem:[#allocation0] sm:$0xf]
    %40 = vrot.lane.b32.xlu0 %v39, 122
    %v41 = vpop.permute.xlu0 %40
    %vm42 = vcmask 7168
    %s43 = scalar_lea.vmem %s1, 6
    %44 = vst.msk [vmem:[%s43] ss:$8 sm:$0xf] %vm42, %v41
    %v45 = vld [vmem:[#allocation0] sm:$0xf]
    %46 = vrot.lane.b32.xlu0 %v45, 121
    %v47 = vpop.permute.xlu0 %46
    %vm48 = vcmask 7168
    %s49 = scalar_lea.vmem %s1, 7
    %50 = vst.msk [vmem:[%s49] ss:$8 sm:$0xf] %vm48, %v47

// kernel: up_convolution_forward.1
$region0: #{up_convolution_forward.1}
  #allocation0 [shape = 'u32[]', space=smem, size = 0x4, offset = 0x4, fixed_abs, tag = 'smem constant byte address 0x4 - core index']
  #allocation1 [shape = 'u32[72,128]{1,0:T(1,128)}', space=vmem, size = 0x9000, scoped, tag = 'internal scratch']
  %s0 = inlined_call_operand.vmem [shape: f32[2,16,192], index: 0, kind: input, shape index: {}]
  %s1 = inlined_call_operand.vmem [shape: bf16[32,16], index: 1, kind: input, shape index: {}]
  %s2 = inlined_call_operand.vmem [shape: f32[32,1], index: 2, kind: input, shape index: {}]
  %s3 = inlined_call_operand.vmem [shape: bf16[2,32,192], index: 3, kind: output, shape index: {}]
  %s4 = sld [smem:[#allocation0]]
  $region45: #{up_convolution_forward.1} parent=0
    _
  %s6 = ssub.s32 1, %s4
  %s7 = scalar_select 0, %s6, %s4
  loop: start=0, step=1, limit=4
  $region2: #{up_convolution_forward.1} parent=0 // loop_pre_header
    _
  $region3: #{up_convolution_forward.1} parent=0 // loop_header
    %s9 = sphi 0, %s13
    %p10 = scmp.ge.s32.totalorder %s9, 4
    %s16 = sphi 0, %s28
    %s17 = sphi 0, %s24
    %s18 = sphi 0, %s16
    %s19 = sphi 0, %s17
    %s20 = sphi 0, %s18
    %s21 = sphi 0, %s19
    %s33 = sphi 0, %s35
    %s36 = sphi 0, %s33
    %s37 = sphi 0, %s36
    %s53 = sphi 0, %s37
    %s57 = sphi 0, %s57
    %s59 = sphi 0, %s57
    %s60 = sphi 0, %s59
    %s74 = sphi 0, %s60
    %s78 = sphi 0, %s78
    %s80 = sphi 0, %s78
    %s81 = sphi 0, %s80
    %s95 = sphi 0, %s81
    %s103 = sphi 0, %s105
    %s106 = sphi 0, %s103
    %s107 = sphi 0, %s106
    %s123 = sphi 0, %s107
  $region4: #{up_convolution_forward.1} parent=0 // loop_header_branch
    %12 = sbr.rel (%p10) target = $region8
  $region5: #{up_convolution_forward.1} parent=0 // loop_body
    %s14 = ssub.s32 %s9, 1
    %s15 = ssub.s32 %s9, 2
    %s22 = sadd.s32 1, %s17
    %p23 = scmp.ge.s32.totalorder %s22, 1
    %s24 = scalar_select %p23, 0, %s22
    %s25 = sadd.s32 1, %s16
    %s26 = scalar_select %p23, %s25, %s16
    %p27 = scmp.ge.s32.totalorder %s26, 2
    %s28 = scalar_select %p27, 0, %s26
    %s29 = ssub.s32 %s16, %s28
    %s30 = ssub.s32 %s17, %s24
    %s31 = sor.u32 %s29, %s30
    %p32 = scmp.eq.s32.totalorder %s31, 0
    %s34 = sadd.s32 %s33, 1
    %s35 = scalar_select %p32, %s33, %s34
    %p38 = pneg %p32
    %p39 = scmp.eq.s32.totalorder %s9, 1
    %p40 = por %p38, %p39
    %p41 = scmp.ne.s32.totalorder %s33, %s36
    %p42 = scmp.eq.s32.totalorder %s9, 0
    %p43 = por %p41, %p42
    %p44 = scmp.ne.s32.totalorder %s33, %s36
    %p45 = scmp.eq.s32.totalorder %s14, 1
    %p46 = por %p44, %p45
    %p47 = scmp.ne.s32.totalorder %s36, %s37
    %p48 = scmp.eq.s32.totalorder %s14, 0
    %p49 = por %p47, %p48
    %p50 = scmp.ne.s32.totalorder %s36, %s37
    %p51 = scmp.eq.s32.totalorder %s15, 1
    %p52 = por %p50, %p51
    %p54 = scmp.ne.s32.totalorder %s37, %s53
    %p55 = scmp.eq.s32.totalorder %s15, 0
    %p56 = por %p54, %p55
    %s58 = sadd.s32 %s57, 1
    %p61 = scmp.eq.s32.totalorder %s9, 1
    %p62 = scmp.ne.s32.totalorder %s57, %s59
    %p63 = scmp.eq.s32.totalorder %s9, 0
    %p64 = por %p62, %p63
    %p65 = scmp.ne.s32.totalorder %s57, %s59
    %p66 = scmp.eq.s32.totalorder %s14, 1
    %p67 = por %p65, %p66
    %p68 = scmp.ne.s32.totalorder %s59, %s60
    %p69 = scmp.eq.s32.totalorder %s14, 0
    %p70 = por %p68, %p69
    %p71 = scmp.ne.s32.totalorder %s59, %s60
    %p72 = scmp.eq.s32.totalorder %s15, 1
    %p73 = por %p71, %p72
    %p75 = scmp.ne.s32.totalorder %s60, %s74
    %p76 = scmp.eq.s32.totalorder %s15, 0
    %p77 = por %p75, %p76
    %s79 = sadd.s32 %s78, 1
    %p82 = scmp.eq.s32.totalorder %s9, 1
    %p83 = scmp.ne.s32.totalorder %s78, %s80
    %p84 = scmp.eq.s32.totalorder %s9, 0
    %p85 = por %p83, %p84
    %p86 = scmp.ne.s32.totalorder %s78, %s80
    %p87 = scmp.eq.s32.totalorder %s14, 1
    %p88 = por %p86, %p87
    %p89 = scmp.ne.s32.totalorder %s80, %s81
    %p90 = scmp.eq.s32.totalorder %s14, 0
    %p91 = por %p89, %p90
    %p92 = scmp.ne.s32.totalorder %s80, %s81
    %p93 = scmp.eq.s32.totalorder %s15, 1
    %p94 = por %p92, %p93
    %p96 = scmp.ne.s32.totalorder %s81, %s95
    %p97 = scmp.eq.s32.totalorder %s15, 0
    %p98 = por %p96, %p97
    %s99 = ssub.s32 %s16, %s28
    %s100 = ssub.s32 %s17, %s24
    %s101 = sor.u32 %s99, %s100
    %p102 = scmp.eq.s32.totalorder %s101, 0
    %s104 = sadd.s32 %s103, 1
    %s105 = scalar_select %p102, %s103, %s104
    %p108 = pneg %p102
    %p109 = scmp.eq.s32.totalorder %s9, 1
    %p110 = por %p108, %p109
    %p111 = scmp.ne.s32.totalorder %s103, %s106
    %p112 = scmp.eq.s32.totalorder %s9, 0
    %p113 = por %p111, %p112
    %p114 = scmp.ne.s32.totalorder %s103, %s106
    %p115 = scmp.eq.s32.totalorder %s14, 1
    %p116 = por %p114, %p115
    %p117 = scmp.ne.s32.totalorder %s106, %s107
    %p118 = scmp.eq.s32.totalorder %s14, 0
    %p119 = por %p117, %p118
    %p120 = scmp.ne.s32.totalorder %s106, %s107
    %p121 = scmp.eq.s32.totalorder %s15, 1
    %p122 = por %p120, %p121
    %p124 = scmp.ne.s32.totalorder %s107, %s123
    %p125 = scmp.eq.s32.totalorder %s15, 0
    %p126 = por %p124, %p125
    %p127 = scmp.le.s32.totalorder 1, %s9
    %p128 = scmp.lt.s32.totalorder %s9, 3
    %p129 = pnand %p127, %p128
    %p130 = pneg %p129
    // Predicated region
    $region9: #{up_convolution_forward.1} parent=5 // pred_check
      _
    $region10: #{up_convolution_forward.1} parent=5 // pred_check_branch
      %132 = sbr.rel (%p129) target = $region12
    $region11: #{up_convolution_forward.1} parent=5 // pred_region
      %s133 = ssub.s32 %s9, 1
      // Predicated region
      $region13: #{up_convolution_forward.1} parent=11 // pred_check
        %p134 = pneg %p70
      $region14: #{up_convolution_forward.1} parent=11 // pred_check_branch
        %136 = sbr.rel (%p134) target = $region16
      $region15: #{up_convolution_forward.1} parent=11 // pred_region
        _
      $region16: #{up_convolution_forward.1} parent=11 // pred_fallthru
        _
      // Predicated region
      $region17: #{up_convolution_forward.1} parent=11 // pred_check
        %p137 = pneg %p91
      $region18: #{up_convolution_forward.1} parent=11 // pred_check_branch
        %139 = sbr.rel (%p137) target = $region20
      $region19: #{up_convolution_forward.1} parent=11 // pred_region
        _
      $region20: #{up_convolution_forward.1} parent=11 // pred_fallthru
        _
    $region12: #{up_convolution_forward.1} parent=5 // pred_fallthru
      _
    %p140 = scmp.lt.s32.totalorder %s9, 2
    // Predicated region
    $region21: #{up_convolution_forward.1} parent=5 // pred_check
      %p141 = pneg %p140
    $region22: #{up_convolution_forward.1} parent=5 // pred_check_branch
      %143 = sbr.rel (%p141) target = $region24
    $region23: #{up_convolution_forward.1} parent=5 // pred_region
      // Predicated region
      $region25: #{up_convolution_forward.1} parent=23 // pred_check
        %p144 = pneg %p43
      $region26: #{up_convolution_forward.1} parent=23 // pred_check_branch
        %146 = sbr.rel (%p144) target = $region28
      $region27: #{up_convolution_forward.1} parent=23 // pred_region
        %s147 = smul.u32 2, %s17
        %p148 = scmp.lt.s32.totalorder %s16, 1
        %s149 = scalar_select %p148, %s16, 1
        %p150 = scmp.lt.s32.totalorder %s147, 1
        %s151 = scalar_select %p150, %s147, 1
        %s152 = smul.addr %s149, 4
        %s153 = sadd.s32 %s151, %s152
        %s154 = smul.addr %s153, 8
        %s155 = scalar_lea.vmem %s0, %s154
        %s156 = smul.u32 2, %s17
      $region28: #{up_convolution_forward.1} parent=23 // pred_fallthru
        _
    $region24: #{up_convolution_forward.1} parent=5 // pred_fallthru
      _
    %p157 = scmp.le.s32.totalorder 1, %s9
    %p158 = scmp.lt.s32.totalorder %s9, 3
    %p159 = pnand %p157, %p158
    %p160 = pneg %p159
    // Predicated region
    $region29: #{up_convolution_forward.1} parent=5 // pred_check
      _
    $region30: #{up_convolution_forward.1} parent=5 // pred_check_branch
      %162 = sbr.rel (%p159) target = $region32
    $region31: #{up_convolution_forward.1} parent=5 // pred_region
      %s163 = ssub.s32 %s9, 1
      %s164 = smul.u32 2, %s19
      %p165 = scmp.lt.s32.totalorder %s18, 1
      %s166 = scalar_select %p165, %s18, 1
      %p167 = scmp.lt.s32.totalorder %s164, 1
      %s168 = scalar_select %p167, %s164, 1
      %s169 = smul.addr %s166, 4
      %s170 = sadd.s32 %s168, %s169
      %s171 = smul.addr %s170, 8
      %s172 = scalar_lea.vmem %s0, %s171
      %p173 = pneg %p49
      %p174 = pneg %p46
      %p175 = pneg %p70
      %p176 = pneg %p67
      %p177 = pneg %p91
      %p178 = pneg %p88
      %p179 = pneg %p119
      %p180 = pneg %p116
      %s181 = smul.u32 2, %s19
      %p182 = scmp.lt.s32.totalorder %s18, 1
      %s183 = scalar_select %p182, %s18, 1
      %p184 = scmp.lt.s32.totalorder %s181, 1
      %s185 = scalar_select %p184, %s181, 1
      %s186 = smul.addr %s183, 8
      %s187 = sadd.s32 %s185, %s186
      %s188 = smul.addr %s187, 4
      %s189 = scalar_lea.vmem %s3, %s188
      %s190 = smul.u32 2, %s19
      %p191 = scmp.lt.s32.totalorder %s18, 1
      %s192 = scalar_select %p191, %s18, 1
      %p193 = scmp.lt.s32.totalorder %s190, 1
      %s194 = scalar_select %p193, %s190, 1
      %s195 = smul.addr %s192, 4
      %s196 = sadd.s32 %s194, %s195
      %s197 = smul.addr %s196, 8
      %s198 = scalar_lea.vmem %s0, %s197
      %s199 = smul.u32 2, %s19
      %s200 = smul.u32 2, %s19
      %p201 = scmp.lt.s32.totalorder %s18, 1
      %s202 = scalar_select %p201, %s18, 1
      %p203 = scmp.lt.s32.totalorder %s200, 1
      %s204 = scalar_select %p203, %s200, 1
      %s205 = smul.addr %s202, 8
      %s206 = sadd.s32 %s204, %s205
      %s207 = smul.addr %s206, 4
      %s208 = scalar_lea.vmem %s3, %s207
      %s209 = smul.u32 2, %s19
      %v211 = vld [vmem:[%s198] sm:$0xff]
      %v212 = vld [vmem:[%s198 + $0x8] sm:$0xff]
      %v213 = vld [vmem:[%s198 + $0x10] sm:$0xff]
      %v214 = vld [vmem:[%s198 + $0x18] sm:$0xff]
      %v215 = vpack.c.bf16 %v213, %v211
      %v216 = vpack.c.bf16 %v214, %v212
      %v217 = vld [vmem:[%s1] sm:$0xf]
      %v218 = vld [vmem:[%s1 + $0x4] sm:$0xf]
      %v219 = vld [vmem:[%s1 + $0x8] sm:$0xf]
      %v220 = vld [vmem:[%s1 + $0xc] sm:$0xf]
      %v221 = vld [vmem:[%s2] sm:$0xff]
      %v222 = vld [vmem:[%s2 + $0x8] sm:$0xff]
      %v223 = vld [vmem:[%s2 + $0x10] sm:$0xff]
      %v224 = vld [vmem:[%s2 + $0x18] sm:$0xff]
      %226 = vset.pattern.permute.xlu0 0
      %227 = vperm.xlu0 %226, %v221
      %v228 = vpop.permute.xlu0 %227
      %231 = vset.pattern.permute.xlu0 0
      %232 = vperm.xlu0 %231, %v222
      %v233 = vpop.permute.xlu0 %232
      %236 = vset.pattern.permute.xlu0 0
      %237 = vperm.xlu0 %236, %v223
      %v238 = vpop.permute.xlu0 %237
      %241 = vset.pattern.permute.xlu0 0
      %242 = vperm.xlu0 %241, %v224
      %v243 = vpop.permute.xlu0 %242
      %v249 = vunpack.c.l.b16 %v217
      %v250 = vunpack.c.l.b16 %v218
      %v251 = vunpack.c.l.b16 %v219
      %v252 = vunpack.c.l.b16 %v220
      %v253 = vpack.c.b16 %v250, %v249
      %v254 = vpack.c.b16 %v252, %v251
      %vm255 = vcmask 130048
      %v257 = vsel %vm255, %v253, 0
      %v260 = vsel %vm255, %v254, 0
      %262 = vmatpush.bf16.msra.mxu0 0
      %263 = vmatpush.bf16.msra.mxu0 0
      %264 = vmatpush.bf16.msra.mxu0 0
      %265 = vmatpush.bf16.msra.mxu0 0
      %266 = vmatpush.bf16.msra.mxu0 0
      %267 = vmatpush.bf16.msra.mxu0 0
      %268 = vmatpush.bf16.msra.mxu0 0
      %269 = vmatpush.bf16.msra.mxu0 %v215
      %270 = vmatmul.bf16.gmra.mxu0 %v257
      %v271 = vpop.f32.mrf.mxu0
      %v272 = vadd.f32 %v228, %v271
      %v273 = vpop.f32.mrf.mxu0
      %v274 = vadd.f32 %v233, %v273
      %275 = vmatmul.bf16.gmra.mxu0 %v260
      %v276 = vpop.f32.mrf.mxu0
      %v277 = vadd.f32 %v238, %v276
      %v278 = vpop.f32.mrf.mxu0
      %v279 = vadd.f32 %v243, %v278
      %280 = vdwg.mxu0
      %281 = vmatpush.bf16.msra.mxu0 0
      %282 = vmatpush.bf16.msra.mxu0 0
      %283 = vmatpush.bf16.msra.mxu0 0
      %284 = vmatpush.bf16.msra.mxu0 0
      %285 = vmatpush.bf16.msra.mxu0 0
      %286 = vmatpush.bf16.msra.mxu0 0
      %287 = vmatpush.bf16.msra.mxu0 0
      %288 = vmatpush.bf16.msra.mxu0 %v216
      %289 = vmatmul.bf16.gmra.mxu0 %v257
      %v290 = vpop.f32.mrf.mxu0
      %v291 = vadd.f32 %v228, %v290
      %v292 = vpop.f32.mrf.mxu0
      %v293 = vadd.f32 %v233, %v292
      %294 = vmatmul.bf16.gmra.mxu0 %v260
      %v295 = vpop.f32.mrf.mxu0
      %v296 = vadd.f32 %v238, %v295
      %v297 = vpop.f32.mrf.mxu0
      %v298 = vadd.f32 %v243, %v297
      %299 = vdwg.mxu0
      %v300 = vpack.c.bf16 %v291, %v272
      %v301 = vpack.c.bf16 %v293, %v274
      %v302 = vpack.c.bf16 %v296, %v277
      %v303 = vpack.c.bf16 %v298, %v279
      %304 = vst [vmem:[%s208] sm:$0xff] %v300
      %305 = vst [vmem:[%s208 + $0x8] sm:$0xff] %v301
      %306 = vst [vmem:[%s208 + $0x10] sm:$0xff] %v302
      %307 = vst [vmem:[%s208 + $0x18] sm:$0xff] %v303
      %s308 = smul.u32 2, %s19
      %p309 = scmp.lt.s32.totalorder %s18, 1
      %s310 = scalar_select %p309, %s18, 1
      %p311 = scmp.lt.s32.totalorder %s308, 1
      %s312 = scalar_select %p311, %s308, 1
      %s313 = smul.addr %s310, 8
      %s314 = sadd.s32 %s312, %s313
      %s315 = smul.addr %s314, 4
      %s316 = scalar_lea.vmem %s3, %s315
      // Predicated region
      $region33: #{up_convolution_forward.1} parent=31 // pred_check
        %p317 = pneg %p116
      $region34: #{up_convolution_forward.1} parent=31 // pred_check_branch
        %319 = sbr.rel (%p317) target = $region36
      $region35: #{up_convolution_forward.1} parent=31 // pred_region
        %s320 = smul.u32 2, %s19
      $region36: #{up_convolution_forward.1} parent=31 // pred_fallthru
        _
    $region32: #{up_convolution_forward.1} parent=5 // pred_fallthru
      _
    %p321 = scmp.le.s32.totalorder 2, %s9
    // Predicated region
    $region37: #{up_convolution_forward.1} parent=5 // pred_check
      %p322 = pneg %p321
    $region38: #{up_convolution_forward.1} parent=5 // pred_check_branch
      %324 = sbr.rel (%p322) target = $region40
    $region39: #{up_convolution_forward.1} parent=5 // pred_region
      %s325 = ssub.s32 %s9, 2
      // Predicated region
      $region41: #{up_convolution_forward.1} parent=39 // pred_check
        %p326 = pneg %p122
      $region42: #{up_convolution_forward.1} parent=39 // pred_check_branch
        %328 = sbr.rel (%p326) target = $region44
      $region43: #{up_convolution_forward.1} parent=39 // pred_region
        %s329 = smul.u32 2, %s21
        %p330 = scmp.lt.s32.totalorder %s20, 1
        %s331 = scalar_select %p330, %s20, 1
        %p332 = scmp.lt.s32.totalorder %s329, 1
        %s333 = scalar_select %p332, %s329, 1
        %s334 = smul.addr %s331, 8
        %s335 = sadd.s32 %s333, %s334
        %s336 = smul.addr %s335, 4
        %s337 = scalar_lea.vmem %s3, %s336
      $region44: #{up_convolution_forward.1} parent=39 // pred_fallthru
        _
    $region40: #{up_convolution_forward.1} parent=5 // pred_fallthru
      _
  $region6: #{up_convolution_forward.1} parent=0 // loop_footer
    %s13 = sadd.s32 1, %s9
  $region7: #{up_convolution_forward.1} parent=0 // loop_footer_branch
    %8 = sbr.rel target = $region3
  $region8: #{up_convolution_forward.1} parent=0 // loop_exit
    _

</llo_original>
